<compile_context>
chip_gen: v6e
topology: v6e:2x2x1
jax: 0.10.0
libtpu: 0.0.40
codegen_flags: <defaults>
</compile_context>

<pallas_src>
import functools
import math

import jax
import jax.numpy as jnp
from jax.experimental import pallas as pl
from jax.experimental.pallas import tpu as pltpu

STATE_DIM = 32   # x_k
INPUT_DIM = 8    # u_k
OBS_DIM = 32     # y_k
BATCH = 8        # trajectories stepped together (fills >= 8 sublanes)

_TWO_PI_OVER_100 = 2.0 * math.pi / 100.0


def _rollout_kernel(t0_ref, cos_ref, sin_ref, x0_ref, u_ref,
                    wb_ref, wc_ref, ws_ref,
                    nxt_ref, obs_ref, x_scr, *, state_dim, steps_per_block):
    """SB fused time steps of the LTV system, iterated over grid=(T/SB,).

    The state is carried across grid steps in the VMEM scratch `x_scr`; the
    stacked, pre-transposed weights have constant index maps so they stay
    resident in VMEM after the first grid step.
    """
    blk = pl.program_id(0)

    @pl.when(blk == 0)
    def _init():
        x_scr[...] = x0_ref[...]

    # Hoist the weight loads out of the unrolled step loop.
    wb = wb_ref[...]
    wc = wc_ref[...]
    ws = ws_ref[...]
    t0 = t0_ref[0]

    base = blk * steps_per_block
    x = x_scr[...]
    for s in range(steps_per_block):          # short, fully unrolled
        k = base + s
        cc = cos_ref[k]                       # scalar SMEM reads (per-step trig)
        ss = sin_ref[k]
        t = t0 + k.astype(jnp.float32)

        # W(t) = Wbase + cos(.)/10 * Wcos + sin(.) * Wsin   (shape (S+I, S+O))
        w = wb + (cc * 0.1) * wc + ss * ws

        # Single fused MXU matmul: [x_k | u_k] @ W(t) -> [x_{k+1} | y_k - t]
        z = jnp.concatenate([x, u_ref[s]], axis=-1)
        res = jnp.dot(z, w, preferred_element_type=jnp.float32)

        x = res[:, :state_dim]
        nxt_ref[s] = x
        obs_ref[s] = res[:, state_dim:] + t   # y_k = C x_k + D u_k + t

    x_scr[...] = x                            # carry state to the next block


def rollout(packed_weights, x0, u_seq, t0):
    """Run T steps of the system in ONE pallas_call (grid over time blocks).

    Args:
      packed_weights: (wbase, wcos, wsin), each (S+I, S+O), pre-transposed.
      x0:    (B, S)    initial state.
      u_seq: (T, B, I) inputs for steps t0, t0+1, ..., t0+T-1.
      t0:    starting system time (scalar or shape-(1,) array).

    Returns:
      next_states:  (T, B, S) with next_states[k]  = x_{k+1}
      observations: (T, B, O) with observations[k] = y_k
    """
    wbase, wcos, wsin = packed_weights
    T, B, I = u_seq.shape
    S = x0.shape[-1]
    K, N = wbase.shape                       # K = S + I, N = S + O
    O = N - S

    # Largest unroll factor (<= 8) that divides T.
    sb = max(d for d in (8, 4, 2, 1) if T % d == 0)

    t0_arr = jnp.asarray(t0, jnp.float32).reshape(1)
    # Tiny (T,) trig tables computed once outside the kernel (SMEM scalars).
    ang = _TWO_PI_OVER_100 * (t0_arr[0] + jnp.arange(T, dtype=jnp.float32))
    cos_tab = jnp.cos(ang)
    sin_tab = jnp.sin(ang)

    grid_spec = pltpu.PrefetchScalarGridSpec(
        num_scalar_prefetch=0,
        grid=(T // sb,),
        in_specs=[
            pl.BlockSpec(memory_space=pltpu.MemorySpace.SMEM),      # t0 scalar
            pl.BlockSpec(memory_space=pltpu.MemorySpace.SMEM),      # cos table
            pl.BlockSpec(memory_space=pltpu.MemorySpace.SMEM),      # sin table
            pl.BlockSpec((B, S), lambda b: (0, 0)),                 # x0 (resident)
            pl.BlockSpec((sb, B, I), lambda b: (b, 0, 0)),          # u stream
            pl.BlockSpec((K, N), lambda b: (0, 0)),                 # wbase (resident)
            pl.BlockSpec((K, N), lambda b: (0, 0)),                 # wcos  (resident)
            pl.BlockSpec((K, N), lambda b: (0, 0)),                 # wsin  (resident)
        ],
        out_specs=[
            pl.BlockSpec((sb, B, S), lambda b: (b, 0, 0)),          # x_{k+1}
            pl.BlockSpec((sb, B, O), lambda b: (b, 0, 0)),          # y_k
        ],
        scratch_shapes=[pltpu.VMEM((B, S), jnp.float32)],           # state carry
    )
    cost = pl.CostEstimate(
        flops=T * (2 * B * K * N + 4 * K * N),
        transcendentals=0,
        bytes_accessed=4 * (3 * K * N + B * S + T * B * I
                            + T * B * N + 2 * T + 1),
    )
    nxt, obs = pl.pallas_call(
        functools.partial(_rollout_kernel, state_dim=S, steps_per_block=sb),
        out_shape=(jax.ShapeDtypeStruct((T, B, S), jnp.float32),
                   jax.ShapeDtypeStruct((T, B, O), jnp.float32)),
        grid_spec=grid_spec,
        compiler_params=pltpu.CompilerParams(
            dimension_semantics=("arbitrary",)),   # time axis is a sequential carry
        cost_estimate=cost,
    )(t0_arr, cos_tab, sin_tab, x0, u_seq, wbase, wcos, wsin)
    return nxt, obs


def pack_weights(a0, a1, b0, b1, c, d):
    """Stack the (out, in) system matrices into pre-transposed fused weights.

    W(t) layout (K = S+I rows, N = S+O cols), applied as [x | u] @ W(t):
        [[ A(t)^T | C^T ],
         [ B(t)^T | D^T ]]
    split into a static base plus cos- and sin-modulated parts.
    """
    s, i = a0.shape[0], b0.shape[1]
    o = c.shape[0]
    wbase = jnp.zeros((s + i, s + o), jnp.float32)
    wbase = wbase.at[:s, :s].set(a0.T).at[s:, :s].set(b0.T)
    wbase = wbase.at[:s, s:].set(c.T).at[s:, s:].set(d.T)
    wcos = jnp.zeros((s + i, s + o), jnp.float32).at[:s, :s].set(a1.T)
    wsin = jnp.zeros((s + i, s + o), jnp.float32).at[s:, :s].set(b1.T)
    return wbase, wcos, wsin


class System:
    """JAX/Pallas mirror of pypose.module.System (concrete batched LTV model).

    forward(state, input) -> (next_state, observation); the internal time
    buffer `_t` advances by 1 after every forward call (forward_hook). For
    multi-step trajectories use `rollout`, which fuses T steps into one kernel
    with an explicit functional time carry (jit / scan friendly).
    """

    def __init__(self, packed_weights):
        self.weights = packed_weights
        self._t = jnp.zeros((1,), jnp.float32)   # register_buffer('_t', zeros(1))
        self.state = None
        self.input = None

    def reset(self, t=0):
        self._t = jnp.full((1,), float(t), jnp.float32)
        return self

    @property
    def systime(self):
        return self._t

    def __call__(self, state, inp):
        return self.forward(state, inp)

    def forward(self, state, inp):
        self.state = jnp.atleast_1d(state)
        self.input = jnp.atleast_1d(inp)
        squeeze = self.state.ndim == 1
        x = self.state[None] if squeeze else self.state
        u = self.input[None] if squeeze else self.input
        nxt, obs = rollout(self.weights, x, u[None], self._t)   # T = 1
        nxt, obs = nxt[0], obs[0]
        if squeeze:
            nxt, obs = nxt[0], obs[0]
        # forward_hook: automatically advance the time step.
        # TODO(synk): under jax.jit/lax.scan this Python-side time mutation is
        # not traced; use `rollout` (explicit t0 carry) for compiled loops.
        self._t = self._t + 1.0
        return nxt, obs

    # TODO(synk): linearization properties (A, B, C, D, c1, c2) use
    # torch.autograd.functional.jacobian in the original module; they map to
    # jax.jacrev over the step function and are not part of the forward path.


def make_params(key):
    ks = jax.random.split(key, 6)
    f = jnp.float32
    a0 = (0.5 * jnp.eye(STATE_DIM, dtype=f)
          + 0.02 * jax.random.normal(ks[0], (STATE_DIM, STATE_DIM), f))
    a1 = 0.1 * jax.random.normal(ks[1], (STATE_DIM, STATE_DIM), f)
    b0 = 0.1 * jax.random.normal(ks[2], (STATE_DIM, INPUT_DIM), f)
    b1 = 0.1 * jax.random.normal(ks[3], (STATE_DIM, INPUT_DIM), f)
    c = 0.1 * jax.random.normal(ks[4], (OBS_DIM, STATE_DIM), f)
    d = 0.1 * jax.random.normal(ks[5], (OBS_DIM, INPUT_DIM), f)
    return a0, a1, b0, b1, c, d


# ----------------------------- pure-JAX reference ----------------------------
def _mm(a, b):
    return jnp.dot(a, b, precision=jax.lax.Precision.HIGHEST)


def ref_step(params, x, u, t):
    a0, a1, b0, b1, c, d = params
    a = a0 + (jnp.cos(_TWO_PI_OVER_100 * t) / 10.0) * a1
    b = b0 + jnp.sin(_TWO_PI_OVER_100 * t) * b1
    nxt = _mm(x, a.T) + _mm(u, b.T)
    obs = _mm(x, c.T) + _mm(u, d.T) + t
    return nxt, obs


def ref_rollout(params, x0, u_seq, t0):
    def step(x, ku):
        kf, u = ku
        nxt, obs = ref_step(params, x, u, t0 + kf)
        return nxt, (nxt, obs)
    ks = jnp.arange(u_seq.shape[0], dtype=jnp.float32)
    _, (nxts, obss) = jax.lax.scan(step, x0, (ks, u_seq))
    return nxts, obss


if __name__ == "__main__":
    key = jax.random.PRNGKey(0)
    kp, kx, ku, kr = jax.random.split(key, 4)

    params = make_params(kp)
    packed = pack_weights(*params)

    # --- single-step forward (module semantics), starting at t = 8 -----------
    state = jax.random.normal(kx, (BATCH, STATE_DIM), jnp.float32)
    inp = jax.random.normal(ku, (BATCH, INPUT_DIM), jnp.float32)

    system = System(packed).reset(t=8)
    next_state, observation = system(state, inp)
    jax.block_until_ready((next_state, observation))

    ref_next, ref_obs = ref_step(params, state, inp, jnp.float32(8.0))
    assert next_state.shape == (BATCH, STATE_DIM)
    assert observation.shape == (BATCH, OBS_DIM)
    assert jnp.allclose(next_state, ref_next, atol=1e-4, rtol=1e-4)
    assert jnp.allclose(observation, ref_obs, atol=1e-4, rtol=1e-4)
    assert float(system.systime[0]) == 9.0    # forward_hook advanced the time

    # --- 1-D (unbatched) path, matching torch.atleast_1d semantics -----------
    s1 = jax.random.normal(kx, (STATE_DIM,), jnp.float32)
    u1 = jax.random.normal(ku, (INPUT_DIM,), jnp.float32)
    sys1 = System(packed).reset(t=3)
    n1, o1 = sys1(s1, u1)
    jax.block_until_ready((n1, o1))
    r1n, r1o = ref_step(params, s1[None], u1[None], jnp.float32(3.0))
    assert n1.shape == (STATE_DIM,) and o1.shape == (OBS_DIM,)
    assert jnp.allclose(n1, r1n[0], atol=1e-4, rtol=1e-4)
    assert jnp.allclose(o1, r1o[0], atol=1e-4, rtol=1e-4)

    # --- fused multi-step rollout: T steps in ONE pallas_call -----------------
    T = 16
    u_seq = jax.random.normal(kr, (T, BATCH, INPUT_DIM), jnp.float32)
    roll_next, roll_obs = jax.jit(rollout)(packed, state, u_seq, 0.0)
    jax.block_until_ready((roll_next, roll_obs))

    ref_roll_next, ref_roll_obs = ref_rollout(params, state, u_seq, jnp.float32(0.0))
    assert roll_next.shape == (T, BATCH, STATE_DIM)
    assert roll_obs.shape == (T, BATCH, OBS_DIM)
    assert jnp.allclose(roll_next, ref_roll_next, atol=1e-4, rtol=1e-4)
    assert jnp.allclose(roll_obs, ref_roll_obs, atol=1e-4, rtol=1e-4)

    print("KERNEL_OK")
</pallas_src>

<mosaic_0001>
module attributes {stable_mosaic.version = 11 : i64} {
  func.func @_rollout_kernel(%arg0: i32, %arg1: memref<1xf32, #tpu.memory_space<smem>>, %arg2: memref<1xf32, #tpu.memory_space<smem>>, %arg3: memref<1xf32, #tpu.memory_space<smem>>, %arg4: memref<8x32xf32, #tpu.memory_space<vmem>>, %arg5: memref<1x8x8xf32, #tpu.memory_space<vmem>>, %arg6: memref<40x64xf32, #tpu.memory_space<vmem>>, %arg7: memref<40x64xf32, #tpu.memory_space<vmem>>, %arg8: memref<40x64xf32, #tpu.memory_space<vmem>>, %arg9: memref<1x8x32xf32, #tpu.memory_space<vmem>>, %arg10: memref<1x8x32xf32, #tpu.memory_space<vmem>>, %arg11: memref<8x32xf32, #tpu.memory_space<vmem>>) attributes {dimension_semantics = [#tpu.dimension_semantics<arbitrary>], iteration_bounds = array<i64: 1>, scalar_prefetch = 0 : i64, scratch_operands = 1 : i64, tpu.core_type = #tpu.core_type<tc>, window_params = [{transform_indices = @transform_0, window_bounds = array<i64: 1>}, {transform_indices = @transform_1, window_bounds = array<i64: 1>}, {transform_indices = @transform_2, window_bounds = array<i64: 1>}, {pipeline_mode = #tpu.pipeline_mode<synchronous>, transform_indices = @transform_3, window_bounds = array<i64: 8, 32>}, {transform_indices = @transform_4, window_bounds = array<i64: 1, 8, 8>}, {pipeline_mode = #tpu.pipeline_mode<synchronous>, transform_indices = @transform_5, window_bounds = array<i64: 40, 64>}, {pipeline_mode = #tpu.pipeline_mode<synchronous>, transform_indices = @transform_6, window_bounds = array<i64: 40, 64>}, {pipeline_mode = #tpu.pipeline_mode<synchronous>, transform_indices = @transform_7, window_bounds = array<i64: 40, 64>}, {transform_indices = @transform_8, window_bounds = array<i64: 1, 8, 32>}, {transform_indices = @transform_9, window_bounds = array<i64: 1, 8, 32>}]} {
    %c0_i32 = arith.constant 0 : i32
    %0 = arith.cmpi eq, %arg0, %c0_i32 : i32
    %1 = arith.extui %0 : i1 to i32
    %c0_i32_0 = arith.constant 0 : i32
    %2 = arith.cmpi ne, %1, %c0_i32_0 : i32
    scf.if %2 {
      %c0_22 = arith.constant 0 : index
      %c0_23 = arith.constant 0 : index
      %38 = vector.load %arg4[%c0_22, %c0_23] : memref<8x32xf32, #tpu.memory_space<vmem>>, vector<8x32xf32>
      %c0_24 = arith.constant 0 : index
      %c0_25 = arith.constant 0 : index
      %39 = vector.load %arg11[%c0_24, %c0_25] : memref<8x32xf32, #tpu.memory_space<vmem>>, vector<8x32xf32>
      tpu.vector_store %arg11[%c0_24, %c0_25], %38 {strides = array<i32>} : memref<8x32xf32, #tpu.memory_space<vmem>>, vector<8x32xf32>,
    } else {
    }
    %c0 = arith.constant 0 : index
    %c0_1 = arith.constant 0 : index
    %3 = vector.load %arg6[%c0, %c0_1] : memref<40x64xf32, #tpu.memory_space<vmem>>, vector<40x64xf32>
    %c0_2 = arith.constant 0 : index
    %c0_3 = arith.constant 0 : index
    %4 = vector.load %arg7[%c0_2, %c0_3] : memref<40x64xf32, #tpu.memory_space<vmem>>, vector<40x64xf32>
    %c0_4 = arith.constant 0 : index
    %c0_5 = arith.constant 0 : index
    %5 = vector.load %arg8[%c0_4, %c0_5] : memref<40x64xf32, #tpu.memory_space<vmem>>, vector<40x64xf32>
    %c0_6 = arith.constant 0 : index
    %6 = memref.load %arg1[%c0_6] : memref<1xf32, #tpu.memory_space<smem>>
    %c1_i32 = arith.constant 1 : i32
    %7 = arith.muli %arg0, %c1_i32 : i32
    %c0_7 = arith.constant 0 : index
    %c0_8 = arith.constant 0 : index
    %8 = vector.load %arg11[%c0_7, %c0_8] : memref<8x32xf32, #tpu.memory_space<vmem>>, vector<8x32xf32>
    %c0_i32_9 = arith.constant 0 : i32
    %9 = arith.addi %7, %c0_i32_9 : i32
    %10 = arith.index_cast %9 : i32 to index
    %11 = memref.load %arg2[%10] : memref<1xf32, #tpu.memory_space<smem>>
    %12 = arith.index_cast %9 : i32 to index
    %13 = memref.load %arg3[%12] : memref<1xf32, #tpu.memory_space<smem>>
    %14 = arith.sitofp %9 : i32 to f32
    %15 = arith.addf %6, %14 : f32
    %cst = arith.constant 1.000000e-01 : f32
    %16 = arith.mulf %11, %cst : f32
    %17 = vector.broadcast %16 : f32 to vector<40x64xf32>
    %18 = arith.mulf %17, %4 : vector<40x64xf32>
    %19 = arith.addf %3, %18 : vector<40x64xf32>
    %20 = vector.broadcast %13 : f32 to vector<40x64xf32>
    %21 = arith.mulf %20, %5 : vector<40x64xf32>
    %22 = arith.addf %19, %21 : vector<40x64xf32>
    %c0_10 = arith.constant 0 : index
    %c0_11 = arith.constant 0 : index
    %c0_12 = arith.constant 0 : index
    %23 = vector.load %arg5[%c0_10, %c0_11, %c0_12] : memref<1x8x8xf32, #tpu.memory_space<vmem>>, vector<1x8x8xf32>
    %24 = vector.shape_cast %23 : vector<1x8x8xf32> to vector<8x8xf32>
    %25 = tpu.concatenate %8, %24 in 1 : vector<8x32xf32>, vector<8x8xf32> -> vector<8x40xf32>
    %cst_13 = arith.constant dense<0.000000e+00> : vector<8x64xf32>
    %26 = tpu.matmul %25, %22, %cst_13 {dimension_numbers = #tpu.dot_dimension_numbers<[1], [0], [0], [1], [0, 0, 1, 1], [], []>} : vector<8x40xf32>, vector<40x64xf32>, vector<8x64xf32> -> vector<8x64xf32>
    %27 = vector.extract_strided_slice %26 {offsets = [0, 0], sizes = [8, 32], strides = [1, 1]} : vector<8x64xf32> to vector<8x32xf32>
    %c0_14 = arith.constant 0 : index
    %c0_15 = arith.constant 0 : index
    %c0_16 = arith.constant 0 : index
    %28 = vector.load %arg9[%c0_14, %c0_15, %c0_16] : memref<1x8x32xf32, #tpu.memory_space<vmem>>, vector<1x8x32xf32>
    %29 = vector.shape_cast %28 : vector<1x8x32xf32> to vector<8x32xf32>
    %30 = vector.shape_cast %27 : vector<8x32xf32> to vector<1x8x32xf32>
    tpu.vector_store %arg9[%c0_14, %c0_15, %c0_16], %30 {strides = array<i32>} : memref<1x8x32xf32, #tpu.memory_space<vmem>>, vector<1x8x32xf32>,
    %31 = vector.extract_strided_slice %26 {offsets = [0, 32], sizes = [8, 32], strides = [1, 1]} : vector<8x64xf32> to vector<8x32xf32>
    %32 = vector.broadcast %15 : f32 to vector<8x32xf32>
    %33 = arith.addf %31, %32 : vector<8x32xf32>
    %c0_17 = arith.constant 0 : index
    %c0_18 = arith.constant 0 : index
    %c0_19 = arith.constant 0 : index
    %34 = vector.load %arg10[%c0_17, %c0_18, %c0_19] : memref<1x8x32xf32, #tpu.memory_space<vmem>>, vector<1x8x32xf32>
    %35 = vector.shape_cast %34 : vector<1x8x32xf32> to vector<8x32xf32>
    %36 = vector.shape_cast %33 : vector<8x32xf32> to vector<1x8x32xf32>
    tpu.vector_store %arg10[%c0_17, %c0_18, %c0_19], %36 {strides = array<i32>} : memref<1x8x32xf32, #tpu.memory_space<vmem>>, vector<1x8x32xf32>,
    %c0_20 = arith.constant 0 : index
    %c0_21 = arith.constant 0 : index
    %37 = vector.load %arg11[%c0_20, %c0_21] : memref<8x32xf32, #tpu.memory_space<vmem>>, vector<8x32xf32>
    tpu.vector_store %arg11[%c0_20, %c0_21], %27 {strides = array<i32>} : memref<8x32xf32, #tpu.memory_space<vmem>>, vector<8x32xf32>,
    return
  }
  func.func @transform_0(%arg0: i32) -> i32 {
    %c0_i32 = arith.constant 0 : i32
    %c0_i32_0 = arith.constant 0 : i32
    return %c0_i32 : i32
  }
  func.func @transform_1(%arg0: i32) -> i32 {
    %c0_i32 = arith.constant 0 : i32
    %c0_i32_0 = arith.constant 0 : i32
    return %c0_i32 : i32
  }
  func.func @transform_2(%arg0: i32) -> i32 {
    %c0_i32 = arith.constant 0 : i32
    %c0_i32_0 = arith.constant 0 : i32
    return %c0_i32 : i32
  }
  func.func @transform_3(%arg0: i32) -> (i32, i32) {
    %c0_i32 = arith.constant 0 : i32
    %c0_i32_0 = arith.constant 0 : i32
    %c0_i32_1 = arith.constant 0 : i32
    return %c0_i32, %c0_i32_0 : i32, i32
  }
  func.func @transform_4(%arg0: i32) -> (i32, i32, i32) {
    %c0_i32 = arith.constant 0 : i32
    %c0_i32_0 = arith.constant 0 : i32
    %c0_i32_1 = arith.constant 0 : i32
    return %arg0, %c0_i32, %c0_i32_0 : i32, i32, i32
  }
  func.func @transform_5(%arg0: i32) -> (i32, i32) {
    %c0_i32 = arith.constant 0 : i32
    %c0_i32_0 = arith.constant 0 : i32
    %c0_i32_1 = arith.constant 0 : i32
    return %c0_i32, %c0_i32_0 : i32, i32
  }
  func.func @transform_6(%arg0: i32) -> (i32, i32) {
    %c0_i32 = arith.constant 0 : i32
    %c0_i32_0 = arith.constant 0 : i32
    %c0_i32_1 = arith.constant 0 : i32
    return %c0_i32, %c0_i32_0 : i32, i32
  }
  func.func @transform_7(%arg0: i32) -> (i32, i32) {
    %c0_i32 = arith.constant 0 : i32
    %c0_i32_0 = arith.constant 0 : i32
    %c0_i32_1 = arith.constant 0 : i32
    return %c0_i32, %c0_i32_0 : i32, i32
  }
  func.func @transform_8(%arg0: i32) -> (i32, i32, i32) {
    %c0_i32 = arith.constant 0 : i32
    %c0_i32_0 = arith.constant 0 : i32
    %c0_i32_1 = arith.constant 0 : i32
    return %arg0, %c0_i32, %c0_i32_0 : i32, i32, i32
  }
  func.func @transform_9(%arg0: i32) -> (i32, i32, i32) {
    %c0_i32 = arith.constant 0 : i32
    %c0_i32_0 = arith.constant 0 : i32
    %c0_i32_1 = arith.constant 0 : i32
    return %arg0, %c0_i32, %c0_i32_0 : i32, i32, i32
  }
}

</mosaic_0001>

<llo_original>
// kernel: tpu_custom_call.1
$region0: #{tpu_custom_call.1}
  #allocation0 [shape = 'u32[]', space=smem, size = 0x4, offset = 0x4, fixed_abs, tag = 'smem constant byte address 0x4 - core index']
  #allocation1 [shape = 'u32[144,128]{1,0:T(1,128)}', space=vmem, size = 0x12000, scoped, tag = 'internal scratch']
  #allocation2 [shape = 'f32[8,32]{1,0:T(8,128)}', space=vmem, size = 0x1000, scoped, tag = 'scratch operand']
  #allocation3 [shape = 'f32[1]{0:T(128)S(6)}', space=smem, size = 0x200, scoped, tag = 'scoped memory for tpu_custom_call.1']
  #allocation4 [shape = 'f32[1]{0:T(128)S(6)}', space=smem, size = 0x200, scoped, tag = 'scoped memory for tpu_custom_call.1']
  #allocation5 [shape = 'f32[1]{0:T(128)S(6)}', space=smem, size = 0x200, scoped, tag = 'scoped memory for tpu_custom_call.1']
  %s0 = inlined_call_operand.<no memory space> [shape: f32[1], index: 0, kind: input, shape index: {}]
  %s1 = inlined_call_operand.<no memory space> [shape: f32[1], index: 1, kind: input, shape index: {}]
  %s2 = inlined_call_operand.<no memory space> [shape: f32[1], index: 2, kind: input, shape index: {}]
  %s3 = inlined_call_operand.hbm [shape: f32[8,32], index: 3, kind: input, shape index: {}]
  %s4 = inlined_call_operand.hbm [shape: f32[1,8,8], index: 4, kind: input, shape index: {}]
  %s5 = inlined_call_operand.hbm [shape: f32[40,64], index: 5, kind: input, shape index: {}]
  %s6 = inlined_call_operand.hbm [shape: f32[40,64], index: 6, kind: input, shape index: {}]
  %s7 = inlined_call_operand.hbm [shape: f32[40,64], index: 7, kind: input, shape index: {}]
  %s8 = inlined_call_operand.hbm [shape: f32[1,8,32], index: 8, kind: output, shape index: {0}]
  %s9 = inlined_call_operand.hbm [shape: f32[1,8,32], index: 9, kind: output, shape index: {1}]
  %10 = xla_tuple %s8, %s9
  %s11 = sld [smem:[#allocation0]]
  $region74: #{tpu_custom_call.1} parent=0
    _
  %s13 = ssub.s32 1, %s11
  %s14 = scalar_select 0, %s13, %s11
  %15 = sst [smem:[#allocation3]] %s0
  %16 = sst [smem:[#allocation4]] %s1
  %17 = sst [smem:[#allocation5]] %s2
  $region1: #{tpu_custom_call.1} parent=0
    #allocation6 [shape = 'u8[4096]{0}', space=vmem, size = 0x1000, scoped, tag = 'input window, operand 3, single buffered']
    #allocation7 [shape = 's32[1]{0}', space=sflag, size = 0x4, scoped, tag = 'scoped memory for tpu_custom_call.1']
    #allocation8 [shape = 's32[1]{0}', space=sflag, size = 0x4, scoped, tag = 'scoped memory for tpu_custom_call.1']
    #allocation9 [shape = 'u8[4096]{0}', space=vmem, size = 0x1000, scoped, tag = 'input window, operand 4, single buffered']
    #allocation10 [shape = 's32[1]{0}', space=sflag, size = 0x4, scoped, tag = 'scoped memory for tpu_custom_call.1']
    #allocation11 [shape = 'u8[20480]{0}', space=vmem, size = 0x5000, scoped, tag = 'input window, operand 5, single buffered']
    #allocation12 [shape = 'u8[20480]{0}', space=vmem, size = 0x5000, scoped, tag = 'input window, operand 6, single buffered']
    #allocation13 [shape = 's32[1]{0}', space=sflag, size = 0x4, scoped, tag = 'scoped memory for tpu_custom_call.1']
    #allocation14 [shape = 'u8[20480]{0}', space=vmem, size = 0x5000, scoped, tag = 'input window, operand 7, single buffered']
    #allocation15 [shape = 'u8[4096]{0}', space=vmem, size = 0x1000, scoped, tag = 'output window, operand 0, single buffered']
    #allocation16 [shape = 'u8[4096]{0}', space=vmem, size = 0x1000, scoped, tag = 'output window, operand 1, single buffered']
    #allocation17 [shape = 's32[1]{0}', space=sflag, size = 0x4, scoped, tag = 'scoped memory for tpu_custom_call.1']
    %18 = vsyncpa [#allocation7], 0
    %19 = vsyncpa [#allocation10], 0
    %20 = vsyncpa [#allocation13], 0
    %21 = vsyncpa [#allocation8], 0
    %22 = vsyncpa [#allocation17], 0
    // Predicated region
    $region2: #{tpu_custom_call.1} parent=1 // pred_check
      _
    $region3: #{tpu_custom_call.1} parent=1 // pred_check_branch
      %24 = sbr.rel (0) target = $region5
    $region4: #{tpu_custom_call.1} parent=1 // pred_region
      _
    $region5: #{tpu_custom_call.1} parent=1 // pred_fallthru
      _
    // Predicated region
    $region6: #{tpu_custom_call.1} parent=1 // pred_check
      _
    $region7: #{tpu_custom_call.1} parent=1 // pred_check_branch
      %26 = sbr.rel (0) target = $region9
    $region8: #{tpu_custom_call.1} parent=1 // pred_region
      _
    $region9: #{tpu_custom_call.1} parent=1 // pred_fallthru
      _
    // Predicated region
    $region10: #{tpu_custom_call.1} parent=1 // pred_check
      _
    $region11: #{tpu_custom_call.1} parent=1 // pred_check_branch
      %28 = sbr.rel (0) target = $region13
    $region12: #{tpu_custom_call.1} parent=1 // pred_region
      _
    $region13: #{tpu_custom_call.1} parent=1 // pred_fallthru
      _
    // Predicated region
    $region14: #{tpu_custom_call.1} parent=1 // pred_check
      _
    $region15: #{tpu_custom_call.1} parent=1 // pred_check_branch
      %30 = sbr.rel (0) target = $region17
    $region16: #{tpu_custom_call.1} parent=1 // pred_region
      %s32 = ssub.s32 128, 128
      %33 = vsyncadd [#allocation7], %s32
      %s35 = sshll.u32 [#allocation6], 4
      %s36 = int_to_ptr.vmem [resolvable:$true] %s35
      %38 = dma.hbm_to_vmem [thread:$0]  %s3, 128, %s36, [#allocation7]
    $region17: #{tpu_custom_call.1} parent=1 // pred_fallthru
      _
    // Predicated region
    $region18: #{tpu_custom_call.1} parent=1 // pred_check
      _
    $region19: #{tpu_custom_call.1} parent=1 // pred_check_branch
      %40 = sbr.rel (0) target = $region21
    $region20: #{tpu_custom_call.1} parent=1 // pred_region
      %s42 = ssub.s32 128, 128
      %43 = vsyncadd [#allocation10], %s42
      %s45 = sshll.u32 [#allocation9], 4
      %s46 = int_to_ptr.vmem [resolvable:$true] %s45
      %48 = dma.hbm_to_vmem [thread:$0]  %s4, 128, %s46, [#allocation10]
    $region21: #{tpu_custom_call.1} parent=1 // pred_fallthru
      _
    // Predicated region
    $region22: #{tpu_custom_call.1} parent=1 // pred_check
      _
    $region23: #{tpu_custom_call.1} parent=1 // pred_check_branch
      %50 = sbr.rel (0) target = $region25
    $region24: #{tpu_custom_call.1} parent=1 // pred_region
      %s52 = ssub.s32 640, 640
      %53 = vsyncadd [#allocation10], %s52
      %s54 = sshll.u32 [#allocation11], 4
      %s55 = int_to_ptr.vmem [resolvable:$true] %s54
      %60 = dma.hbm_to_vmem [thread:$0]  %s5, 640, %s55, [#allocation10], 128, 128, 8
    $region25: #{tpu_custom_call.1} parent=1 // pred_fallthru
      _
    // Predicated region
    $region26: #{tpu_custom_call.1} parent=1 // pred_check
      _
    $region27: #{tpu_custom_call.1} parent=1 // pred_check_branch
      %62 = sbr.rel (0) target = $region29
    $region28: #{tpu_custom_call.1} parent=1 // pred_region
      %s64 = ssub.s32 640, 640
      %65 = vsyncadd [#allocation13], %s64
      %s66 = sshll.u32 [#allocation12], 4
      %s67 = int_to_ptr.vmem [resolvable:$true] %s66
      %72 = dma.hbm_to_vmem [thread:$0]  %s6, 640, %s67, [#allocation13], 128, 128, 8
    $region29: #{tpu_custom_call.1} parent=1 // pred_fallthru
      _
    // Predicated region
    $region30: #{tpu_custom_call.1} parent=1 // pred_check
      _
    $region31: #{tpu_custom_call.1} parent=1 // pred_check_branch
      %74 = sbr.rel (0) target = $region33
    $region32: #{tpu_custom_call.1} parent=1 // pred_region
      %s76 = ssub.s32 640, 640
      %77 = vsyncadd [#allocation13], %s76
      %s78 = sshll.u32 [#allocation14], 4
      %s79 = int_to_ptr.vmem [resolvable:$true] %s78
      %84 = dma.hbm_to_vmem [thread:$0]  %s7, 640, %s79, [#allocation13], 128, 128, 8
    $region33: #{tpu_custom_call.1} parent=1 // pred_fallthru
      _
    // Predicated region
    $region34: #{tpu_custom_call.1} parent=1 // pred_check
      _
    $region35: #{tpu_custom_call.1} parent=1 // pred_check_branch
      %86 = sbr.rel (0) target = $region37
    $region36: #{tpu_custom_call.1} parent=1 // pred_region
      %87 = dma.done [#allocation7], 128
    $region37: #{tpu_custom_call.1} parent=1 // pred_fallthru
      _
    // Predicated region
    $region38: #{tpu_custom_call.1} parent=1 // pred_check
      _
    $region39: #{tpu_custom_call.1} parent=1 // pred_check_branch
      %89 = sbr.rel (0) target = $region41
    $region40: #{tpu_custom_call.1} parent=1 // pred_region
      %90 = dma.done [#allocation10], 128
    $region41: #{tpu_custom_call.1} parent=1 // pred_fallthru
      _
    // Predicated region
    $region42: #{tpu_custom_call.1} parent=1 // pred_check
      _
    $region43: #{tpu_custom_call.1} parent=1 // pred_check_branch
      %92 = sbr.rel (0) target = $region45
    $region44: #{tpu_custom_call.1} parent=1 // pred_region
      %93 = dma.done [#allocation10], 640
    $region45: #{tpu_custom_call.1} parent=1 // pred_fallthru
      _
    // Predicated region
    $region46: #{tpu_custom_call.1} parent=1 // pred_check
      _
    $region47: #{tpu_custom_call.1} parent=1 // pred_check_branch
      %95 = sbr.rel (0) target = $region49
    $region48: #{tpu_custom_call.1} parent=1 // pred_region
      %96 = dma.done [#allocation13], 640
    $region49: #{tpu_custom_call.1} parent=1 // pred_fallthru
      _
    // Predicated region
    $region50: #{tpu_custom_call.1} parent=1 // pred_check
      _
    $region51: #{tpu_custom_call.1} parent=1 // pred_check_branch
      %98 = sbr.rel (0) target = $region53
    $region52: #{tpu_custom_call.1} parent=1 // pred_region
      %99 = dma.done [#allocation13], 640
    $region53: #{tpu_custom_call.1} parent=1 // pred_fallthru
      _
    %p100 = scmp.eq.s32.totalorder 0, 0
    // Predicated region
    $region54: #{tpu_custom_call.1} parent=1 // pred_check
      %p101 = pneg %p100
    $region55: #{tpu_custom_call.1} parent=1 // pred_check_branch
      %103 = sbr.rel (%p101) target = $region57
    $region56: #{tpu_custom_call.1} parent=1 // pred_region
      %v104 = vld [vmem:[#allocation6] sm:$0xff]
      %vm105 = vcmask 261120
      %106 = vst.msk [vmem:[#allocation2] sm:$0xff] %vm105, %v104
    $region57: #{tpu_custom_call.1} parent=1 // pred_fallthru
      _
    %v107 = vld [vmem:[#allocation11] sm:$0xff]
    %v108 = vld [vmem:[#allocation11 + $0x8] sm:$0xff]
    %v109 = vld [vmem:[#allocation11 + $0x10] sm:$0xff]
    %v110 = vld [vmem:[#allocation11 + $0x18] sm:$0xff]
    %v111 = vld [vmem:[#allocation11 + $0x20] sm:$0xff]
    %v112 = vld [vmem:[#allocation12] sm:$0xff]
    %v113 = vld [vmem:[#allocation12 + $0x8] sm:$0xff]
    %v114 = vld [vmem:[#allocation12 + $0x10] sm:$0xff]
    %v115 = vld [vmem:[#allocation12 + $0x18] sm:$0xff]
    %v116 = vld [vmem:[#allocation12 + $0x20] sm:$0xff]
    %v117 = vld [vmem:[#allocation14] sm:$0xff]
    %v118 = vld [vmem:[#allocation14 + $0x8] sm:$0xff]
    %v119 = vld [vmem:[#allocation14 + $0x10] sm:$0xff]
    %v120 = vld [vmem:[#allocation14 + $0x18] sm:$0xff]
    %v121 = vld [vmem:[#allocation14 + $0x20] sm:$0xff]
    %s122 = sld [smem:[#allocation3]]
    %v123 = vld [vmem:[#allocation2] sm:$0xff]
    %s124 = sld [smem:[#allocation4]]
    %s125 = sld [smem:[#allocation5]]
    %s126 = scvt.s32.f32 0
    %s127 = sadd.f32 %s122, %s126
    %s128 = smul.f32 %s124, 0.1
    %v129 = vstv %s128
    %v130 = vmul.f32 %v129, %v112
    %v131 = vmul.f32 %v129, %v113
    %v132 = vmul.f32 %v129, %v114
    %v133 = vmul.f32 %v129, %v115
    %v134 = vmul.f32 %v129, %v116
    %v135 = vadd.f32 %v107, %v130
    %v136 = vadd.f32 %v108, %v131
    %v137 = vadd.f32 %v109, %v132
    %v138 = vadd.f32 %v110, %v133
    %v139 = vadd.f32 %v111, %v134
    %v140 = vstv %s125
    %v141 = vmul.f32 %v140, %v117
    %v142 = vmul.f32 %v140, %v118
    %v143 = vmul.f32 %v140, %v119
    %v144 = vmul.f32 %v140, %v120
    %v145 = vmul.f32 %v140, %v121
    %v146 = vadd.f32 %v135, %v141
    %v147 = vadd.f32 %v136, %v142
    %v148 = vadd.f32 %v137, %v143
    %v149 = vadd.f32 %v138, %v144
    %v150 = vadd.f32 %v139, %v145
    %v151 = vld [vmem:[#allocation9] sm:$0xff]
    %153 = vrot.lane.b32.xlu0 %v151, 32
    %v154 = vpop.permute.xlu0 %153
    %vm156 = vcmask 261120
    %v157 = vsel %vm156, %v123, %v154
    %vm158 = vcmask 326656
    %v160 = vsel %vm158, %v157, 0
    %162 = vmatprep.subr.mxu0 0.0
    %163 = vmatpush1.msra.mxu0 0.0
    %164 = vmatprep.subr.mxu0 0.0
    %165 = vmatpush1.msra.mxu0 0.0
    %166 = vmatprep.subr.mxu0 0.0
    %167 = vmatpush1.msra.mxu0 0.0
    %168 = vmatprep.subr.mxu0 0.0
    %169 = vmatpush1.msra.mxu0 0.0
    %170 = vmatprep.subr.mxu0 0.0
    %171 = vmatpush1.msra.mxu0 0.0
    %172 = vmatprep.subr.mxu0 0.0
    %173 = vmatpush1.msra.mxu0 0.0
    %174 = vmatprep.subr.mxu0 0.0
    %175 = vmatpush1.msra.mxu0 0.0
    %176 = vmatprep.subr.mxu0 0.0
    %177 = vmatpush1.msra.mxu0 0.0
    %178 = vmatprep.subr.mxu0 0.0
    %179 = vmatpush1.msra.mxu0 0.0
    %180 = vmatprep.subr.mxu0 0.0
    %181 = vmatpush1.msra.mxu0 0.0
    %182 = vmatprep.subr.mxu0 0.0
    %183 = vmatpush1.msra.mxu0 0.0
    %184 = vmatprep.subr.mxu0 0.0
    %185 = vmatpush1.msra.mxu0 %v150
    %186 = vmatprep.subr.mxu0 0.0
    %187 = vmatpush1.msra.mxu0 %v149
    %188 = vmatprep.subr.mxu0 0.0
    %189 = vmatpush1.msra.mxu0 %v148
    %190 = vmatprep.subr.mxu0 0.0
    %191 = vmatpush1.msra.mxu0 %v147
    %192 = vmatprep.subr.mxu0 0.0
    %193 = vmatpush1.msra.mxu0 %v146
    %194 = vmatprep.subr.mxu0 0.0
    %195 = vmatpush2.msra.mxu0 0.0
    %196 = vmatprep.subr.mxu0 0.0
    %197 = vmatpush2.msra.mxu0 0.0
    %198 = vmatprep.subr.mxu0 0.0
    %199 = vmatpush2.msra.mxu0 0.0
    %200 = vmatprep.subr.mxu0 0.0
    %201 = vmatpush2.msra.mxu0 0.0
    %202 = vmatprep.subr.mxu0 0.0
    %203 = vmatpush2.msra.mxu0 0.0
    %204 = vmatprep.subr.mxu0 0.0
    %205 = vmatpush2.msra.mxu0 0.0
    %206 = vmatprep.subr.mxu0 0.0
    %207 = vmatpush2.msra.mxu0 0.0
    %208 = vmatprep.subr.mxu0 0.0
    %209 = vmatpush2.msra.mxu0 0.0
    %210 = vmatprep.subr.mxu0 0.0
    %211 = vmatpush2.msra.mxu0 0.0
    %212 = vmatprep.subr.mxu0 0.0
    %213 = vmatpush2.msra.mxu0 0.0
    %214 = vmatprep.subr.mxu0 0.0
    %215 = vmatpush2.msra.mxu0 0.0
    %216 = vmatprep.subr.mxu0 0.0
    %217 = vmatpush2.msra.mxu0 0.0
    %218 = vmatprep.subr.mxu0 0.0
    %219 = vmatpush2.msra.mxu0 0.0
    %220 = vmatprep.subr.mxu0 0.0
    %221 = vmatpush2.msra.mxu0 0.0
    %222 = vmatprep.subr.mxu0 0.0
    %223 = vmatpush2.msra.mxu0 0.0
    %224 = vmatprep.subr.mxu0 0.0
    %225 = vmatpush2.msra.mxu0 0.0
    %226 = vmatprep.mubr.f32.mxu0 0.0
    %227 = vmatmul.mubr.f32.gmra.mxu0 %v160
    %v228 = vpop.f32.mrf.mxu0
    %v229 = vadd.f32 0.0, %v228
    %v230 = vpop.f32.mrf.mxu0
    %231 = vdwg.mxu0
    %232 = vst.msk [vmem:[#allocation15] sm:$0xff] %vm156, %v229
    %v233 = vstv %s127
    %v234 = vadd.f32 %v229, %v233
    %236 = vrot.lane.b32.xlu0 %v234, 96
    %v237 = vpop.permute.xlu0 %236
    %239 = vst.msk [vmem:[#allocation16] sm:$0xff] %vm156, %v237
    %240 = vst.msk [vmem:[#allocation2] sm:$0xff] %vm156, %v229
    // Predicated region
    $region58: #{tpu_custom_call.1} parent=1 // pred_check
      _
    $region59: #{tpu_custom_call.1} parent=1 // pred_check_branch
      %242 = sbr.rel (0) target = $region61
    $region60: #{tpu_custom_call.1} parent=1 // pred_region
      %s244 = ssub.s32 128, 128
      %245 = vsyncadd [#allocation8], %s244
      %s247 = sshll.u32 [#allocation15], 4
      %s248 = int_to_ptr.vmem [resolvable:$true] %s247
      %250 = dma.vmem_to_hbm [thread:$0]  %s248, 128, %s8, [#allocation8]
    $region61: #{tpu_custom_call.1} parent=1 // pred_fallthru
      _
    // Predicated region
    $region62: #{tpu_custom_call.1} parent=1 // pred_check
      _
    $region63: #{tpu_custom_call.1} parent=1 // pred_check_branch
      %252 = sbr.rel (0) target = $region65
    $region64: #{tpu_custom_call.1} parent=1 // pred_region
      %s254 = ssub.s32 128, 128
      %255 = vsyncadd [#allocation17], %s254
      %s257 = sshll.u32 [#allocation16], 4
      %s258 = int_to_ptr.vmem [resolvable:$true] %s257
      %260 = dma.vmem_to_hbm [thread:$0]  %s258, 128, %s9, [#allocation17]
    $region65: #{tpu_custom_call.1} parent=1 // pred_fallthru
      _
    // Predicated region
    $region66: #{tpu_custom_call.1} parent=1 // pred_check
      _
    $region67: #{tpu_custom_call.1} parent=1 // pred_check_branch
      %262 = sbr.rel (0) target = $region69
    $region68: #{tpu_custom_call.1} parent=1 // pred_region
      %263 = dma.done [#allocation8], 128
    $region69: #{tpu_custom_call.1} parent=1 // pred_fallthru
      _
    // Predicated region
    $region70: #{tpu_custom_call.1} parent=1 // pred_check
      _
    $region71: #{tpu_custom_call.1} parent=1 // pred_check_branch
      %265 = sbr.rel (0) target = $region73
    $region72: #{tpu_custom_call.1} parent=1 // pred_region
      %266 = dma.done [#allocation17], 128
    $region73: #{tpu_custom_call.1} parent=1 // pred_fallthru
      _
    %267 = vsyncpa [#allocation7], 1
    %268 = vsyncpa [#allocation10], 1
    %269 = vsyncpa [#allocation13], 1
    %270 = vsyncpa [#allocation8], 1
    %271 = vsyncpa [#allocation17], 1

</llo_original>
